<compile_context>
chip_gen: v7x
topology: tpu7x:2x2x1
jax: 0.10.0
libtpu: 0.0.40
codegen_flags: <defaults>
</compile_context>

<pallas_src>
import functools

import jax
import jax.numpy as jnp
from jax.experimental import pallas as pl
from jax.experimental.pallas import tpu as pltpu


def _round_up(x, m):
    return (x + m - 1) // m * m


def extra_embedding3d_kernel(bn_ref, xs_ref, p1_ref, emb_ref, w2_ref, o_ref, *,
                             B, bins, tb, pmin, pmax, cmin, cmax):
    """Fused ExtraEmbedding3D forward, one tile of `tb` channel-stacked rows.

    bn_ref : SMEM f32[4]                = [gamma0, gamma1, beta0, beta1]
    xs_ref : VMEM f32[rows_pad, 1]      = channel-stacked extra_fea column
                                          (rows 0..B-1 pressure, B..2B-1 co2frac)
    p1_ref : VMEM f32[8, H2]            = row 0: w1, row 1: b1 (project1), pad
    emb_ref: VMEM bf16[2*bins, H2]      = pressure table then co2frac table
    w2_ref : VMEM bf16[2H+2, H]         = rows 0..H: Wa^T, H..2H: Wb^T,
                                          2H: ba, 2H+1: bb (project2)
    o_ref  : VMEM f32[tb, H]            = channel-stacked output rows
    """
    i = pl.program_id(0)
    H2 = p1_ref.shape[1]
    H = o_ref.shape[1]

    w1 = p1_ref[0:1, :]                                        # [1, H2] f32
    b1 = p1_ref[1:2, :]                                        # [1, H2] f32

    # --- BatchNorm1d(2) batch statistics, exact rank-1 closed form ---------
    # x[b,j] = col[b]*w1[j] + b1[j]
    #   mean = mean_b(col)*mean_j(w1) + mean_j(b1)
    #   var  = var_b(col)*mean_j(w1^2) + mean_j(d^2),
    #   d[j] = mean_b(col)*w1[j] + b1[j] - mean   (zero mean over j)
    # (sums of squares of centered terms -> no E[x^2]-E[x]^2 cancellation)
    inv_B = 1.0 / float(B)
    inv_H2 = 1.0 / float(H2)
    mw = jnp.sum(w1, axis=1, keepdims=True) * inv_H2           # [1,1]
    mb = jnp.sum(b1, axis=1, keepdims=True) * inv_H2
    mw2 = jnp.sum(w1 * w1, axis=1, keepdims=True) * inv_H2

    def channel_stats(col, gamma):
        mcol = jnp.sum(col, axis=0, keepdims=True) * inv_B     # [1,1]
        cvar = jnp.sum((col - mcol) ** 2, axis=0, keepdims=True) * inv_B
        mean = mcol * mw + mb                                   # [1,1]
        d = mcol * w1 + b1 - mean                               # [1,H2]
        var = cvar * mw2 + jnp.sum(d * d, axis=1, keepdims=True) * inv_H2
        scale = gamma * jax.lax.rsqrt(var + 1e-5)               # [1,1]
        return mean, scale

    mean_p, s_p = channel_stats(xs_ref[0:B, :], bn_ref[0])      # pressure
    mean_c, s_c = channel_stats(xs_ref[B:2 * B, :], bn_ref[1])  # co2frac

    # --- current tile of the channel-stacked scalar column -----------------
    row0 = pl.multiple_of(i * tb, 8)
    xt = xs_ref[pl.ds(row0, tb), :]                             # [tb, 1]
    ridx = i * tb + jax.lax.broadcasted_iota(jnp.int32, (tb, 1), 0)
    is_p = ridx < B                                             # pressure rows

    # per-row (channel) selection of BN / bucketization scalars (VPU selects)
    mean_r = jnp.where(is_p, mean_p, mean_c)                    # [tb,1]
    s_r = jnp.where(is_p, s_p, s_c)
    beta_r = jnp.where(is_p, bn_ref[2], bn_ref[3])
    lo_r = jnp.where(is_p, pmin, cmin)
    hi_r = jnp.where(is_p, pmax, cmax)
    inv_rng_r = jnp.where(is_p, 1.0 / (pmax - pmin), 1.0 / (cmax - cmin))

    # project1 + BatchNorm as one broadcast FMA over [tb, H2]
    bn_tile = (xt * w1 + b1 - mean_r) * s_r + beta_r            # [tb, H2] f32

    # fused embedding lookup: single one-hot [tb, 2*bins] matmul against the
    # channel-stacked table (co2frac indices offset by `bins`).
    v01 = (jnp.clip(xt, lo_r, hi_r) - lo_r) * inv_rng_r
    idx = jnp.floor(v01 * float(bins)).astype(jnp.int32)
    # TODO(synk): PyTorch indexes out-of-range when the input equals the exact
    # max (floor(1.0*bins) == bins); we clamp to the last bucket instead.
    idx = jnp.clip(idx, 0, bins - 1) + jnp.where(is_p, 0, bins)
    lanes = jax.lax.broadcasted_iota(jnp.int32, (tb, 2 * bins), 1)
    onehot = jnp.where(lanes == idx, 1.0, 0.0).astype(jnp.bfloat16)
    emb_tile = jnp.dot(onehot, emb_ref[...],
                       preferred_element_type=jnp.float32)      # [tb, H2] f32

    # project2: Linear(H,H) -> Softplus -> Linear(H,H).  First matmul is split
    # over the [bn | emb] feature halves so env_repr is never concatenated.
    wa_top = w2_ref[0:H2, :]                                    # [H2, H] bf16
    wa_bot = w2_ref[H2:H, :]                                    # [H2, H] bf16
    wb = w2_ref[H:2 * H, :]                                     # [H,  H] bf16
    ba = w2_ref[2 * H:2 * H + 1, :].astype(jnp.float32)         # [1, H]
    bb = w2_ref[2 * H + 1:2 * H + 2, :].astype(jnp.float32)     # [1, H]

    h = (jnp.dot(bn_tile.astype(jnp.bfloat16), wa_top,
                 preferred_element_type=jnp.float32)
         + jnp.dot(emb_tile.astype(jnp.bfloat16), wa_bot,
                   preferred_element_type=jnp.float32)
         + ba)
    # Softplus (beta=1), numerically stable: max(x,0) + log1p(exp(-|x|))
    sp = jnp.maximum(h, 0.0) + jnp.log1p(jnp.exp(-jnp.abs(h)))
    y = jnp.dot(sp.astype(jnp.bfloat16), wb,
                preferred_element_type=jnp.float32) + bb
    o_ref[...] = y.astype(o_ref.dtype)


def extra_embedding3d(extra_fea, params, min_max_key, bins=32):
    """extra_fea: [B, 2]; params: PyTorch-layout weights. Returns [B, 2, H] f32."""
    B, E = extra_fea.shape
    assert E == 2, "orig_extra_dim != 2 not supported"
    # TODO(synk): orig_extra_dim > 2 (zero-padded embedding channels) and
    # eval-mode BatchNorm (running stats) are not implemented; this matches the
    # module's training-mode forward (batch statistics), like the PyTorch default.

    w1 = params["proj1_w"].reshape(1, -1).astype(jnp.float32)            # [1, H2]
    b1 = params["proj1_b"].reshape(1, -1).astype(jnp.float32)            # [1, H2]
    H2 = w1.shape[1]
    H = 2 * H2

    # f32 slab: project1 weight/bias (kept f32 so BN statistics stay exact).
    p1 = jnp.concatenate([w1, b1, jnp.zeros((6, H2), jnp.float32)], axis=0)

    # bf16 slabs: channel-stacked embedding tables + project2 weights/biases.
    emb = jnp.concatenate([params["pressure_embed"], params["co2frac_embed"]],
                          axis=0).astype(jnp.bfloat16)                   # [2*bins, H2]
    assert emb.shape == (2 * bins, H2)
    w2 = jnp.concatenate(
        [params["lin1_w"].T, params["lin2_w"].T,
         params["lin1_b"].reshape(1, H), params["lin2_b"].reshape(1, H)],
        axis=0).astype(jnp.bfloat16)                                     # [2H+2, H]

    # BatchNorm1d(2) affine scalars -> SMEM: [gamma0, gamma1, beta0, beta1]
    bn_aff = jnp.concatenate([params["bn_gamma"].reshape(-1),
                              params["bn_beta"].reshape(-1)]).astype(jnp.float32)

    # channel-major stacked column: rows 0..B-1 = pressure, B..2B-1 = co2frac.
    xs = extra_fea.astype(jnp.float32).T.reshape(2 * B, 1)
    rows = 2 * B
    # >=256 MXU rows per step when the batch allows (v5e/v6e fill), capped at 512.
    tb = min(_round_up(rows, 8), 512)
    rows_pad = _round_up(rows, tb)
    if rows_pad > rows:
        xs = jnp.concatenate(
            [xs, jnp.zeros((rows_pad - rows, 1), jnp.float32)], axis=0)

    pmin, pmax = (float(v) for v in min_max_key["pressure"])
    cmin, cmax = (float(v) for v in min_max_key["co2frac"])

    kernel = functools.partial(extra_embedding3d_kernel, B=B, bins=bins, tb=tb,
                               pmin=pmin, pmax=pmax, cmin=cmin, cmax=cmax)

    # NOTE: param slabs use constant index_maps -> Pallas skips re-DMA across
    # grid steps (they stay VMEM-resident); at realistic H the bf16 w2 slab is
    # the only sizeable buffer, comfortably inside the default scoped VMEM
    # (including v7x's 64 MiB).  Demo H=32 (<128 lanes) uses masked stores.
    out_flat = pl.pallas_call(
        kernel,
        out_shape=jax.ShapeDtypeStruct((rows_pad, H), jnp.float32),
        grid=(rows_pad // tb,),
        in_specs=[
            pl.BlockSpec(memory_space=pltpu.MemorySpace.SMEM),    # BN gamma/beta
            pl.BlockSpec((rows_pad, 1), lambda i: (0, 0)),        # stacked extra_fea
            pl.BlockSpec((8, H2), lambda i: (0, 0)),              # f32 project1 params
            pl.BlockSpec((2 * bins, H2), lambda i: (0, 0)),       # bf16 embed tables
            pl.BlockSpec((2 * H + 2, H), lambda i: (0, 0)),       # bf16 project2 params
        ],
        out_specs=pl.BlockSpec((tb, H), lambda i: (i, 0)),
        compiler_params=pltpu.CompilerParams(
            dimension_semantics=("parallel",)),
    )(bn_aff, xs, p1, emb, w2)

    # channel-major [2B, H] -> PyTorch layout [B, 2, H] (layout plumbing only)
    return out_flat[:rows].reshape(2, B, H).transpose(1, 0, 2)


def reference_extra_embedding3d(extra_fea, params, min_max_key, bins=32):
    """Pure-JAX reference mirroring the PyTorch training-mode forward (f32)."""
    x = extra_fea.astype(jnp.float32)
    w1 = params["proj1_w"].reshape(-1).astype(jnp.float32)               # [H2]
    b1 = params["proj1_b"].reshape(-1).astype(jnp.float32)               # [H2]

    proj = x[:, :, None] * w1[None, None, :] + b1[None, None, :]         # [B, 2, H2]
    mean = proj.mean(axis=(0, 2), keepdims=True)
    var = ((proj - mean) ** 2).mean(axis=(0, 2), keepdims=True)          # biased
    gamma = params["bn_gamma"].astype(jnp.float32)[None, :, None]
    beta = params["bn_beta"].astype(jnp.float32)[None, :, None]
    bn = (proj - mean) / jnp.sqrt(var + 1e-5) * gamma + beta

    def embed(v, key, table):
        lo, hi = (float(t) for t in min_max_key[key])
        v = jnp.clip(v, lo, hi)
        v01 = (v - lo) * (1.0 / (hi - lo))
        idx = jnp.clip(jnp.floor(v01 * bins).astype(jnp.int32), 0, bins - 1)
        return table[idx]

    p_emb = embed(x[:, 0], "pressure", params["pressure_embed"].astype(jnp.float32))
    c_emb = embed(x[:, 1], "co2frac", params["co2frac_embed"].astype(jnp.float32))
    embed_repr = jnp.stack([p_emb, c_emb], axis=1)                       # [B, 2, H2]
    env = jnp.concatenate([bn, embed_repr], axis=-1)                     # [B, 2, H]

    hp = jax.lax.Precision.HIGHEST
    h = jnp.einsum("beh,hk->bek", env, params["lin1_w"].T.astype(jnp.float32),
                   precision=hp) + params["lin1_b"].astype(jnp.float32)
    sp = jnp.maximum(h, 0.0) + jnp.log1p(jnp.exp(-jnp.abs(h)))           # softplus
    y = jnp.einsum("beh,hk->bek", sp, params["lin2_w"].T.astype(jnp.float32),
                   precision=hp) + params["lin2_b"].astype(jnp.float32)
    return y


if __name__ == "__main__":
    key = jax.random.PRNGKey(0)
    B, hidden_dim, bins = 8, 32, 32
    H2 = hidden_dim // 2
    min_max_key = {"pressure": (0.0, 10.0), "co2frac": (0.0, 1.0)}

    keys = jax.random.split(key, 10)
    pressure = jax.random.uniform(keys[0], (B,), minval=0.2, maxval=9.8)
    co2frac = jax.random.uniform(keys[1], (B,), minval=0.02, maxval=0.98)
    extra_fea = jnp.stack([pressure, co2frac], axis=1).astype(jnp.float32)  # [B, 2]

    bound = 1.0 / (hidden_dim ** 0.5)
    params = {
        # project1: Linear(1, H/2)
        "proj1_w": jax.random.normal(keys[2], (H2, 1), jnp.float32) * 0.5,
        "proj1_b": jax.random.normal(keys[3], (H2,), jnp.float32) * 0.1,
        # norm1: BatchNorm1d(2) affine
        "bn_gamma": jax.random.uniform(keys[4], (2,), minval=0.5, maxval=1.5),
        "bn_beta": jax.random.normal(keys[5], (2,), jnp.float32) * 0.1,
        # embeddings [bins, H/2]
        "pressure_embed": jax.random.normal(keys[6], (bins, H2), jnp.float32),
        "co2frac_embed": jax.random.normal(keys[7], (bins, H2), jnp.float32),
        # project2 = NonLinearHead(H, H): Linear(H,H) -> Softplus -> Linear(H,H)
        "lin1_w": jax.random.uniform(keys[8], (hidden_dim, hidden_dim),
                                     minval=-bound, maxval=bound, dtype=jnp.float32),
        "lin1_b": jax.random.uniform(keys[8], (hidden_dim,),
                                     minval=-bound, maxval=bound, dtype=jnp.float32),
        "lin2_w": jax.random.uniform(keys[9], (hidden_dim, hidden_dim),
                                     minval=-bound, maxval=bound, dtype=jnp.float32),
        "lin2_b": jax.random.uniform(keys[9], (hidden_dim,),
                                     minval=-bound, maxval=bound, dtype=jnp.float32),
    }

    out = extra_embedding3d(extra_fea, params, min_max_key, bins=bins)
    out = jax.block_until_ready(out)
    assert out.shape == (B, 2, hidden_dim), out.shape

    # (a) tight check vs a reference using bf16-rounded project2 weights /
    #     embedding tables (isolates the deliberate bf16-storage quantization).
    params_bf16 = dict(params)
    for k in ("pressure_embed", "co2frac_embed",
              "lin1_w", "lin1_b", "lin2_w", "lin2_b"):
        params_bf16[k] = params[k].astype(jnp.bfloat16).astype(jnp.float32)
    ref_bf16 = jax.block_until_ready(
        reference_extra_embedding3d(extra_fea, params_bf16, min_max_key, bins=bins))
    err_bf16 = float(jnp.max(jnp.abs(out - ref_bf16)))
    assert jnp.allclose(out, ref_bf16, atol=2e-2, rtol=2e-2), err_bf16

    # (b) looser check vs the exact f32 PyTorch-semantics reference; slack
    #     reflects the reviewer-endorsed bf16 weight storage.
    ref_f32 = jax.block_until_ready(
        reference_extra_embedding3d(extra_fea, params, min_max_key, bins=bins))
    err_f32 = float(jnp.max(jnp.abs(out - ref_f32)))
    assert jnp.allclose(out, ref_f32, atol=5e-2, rtol=5e-2), err_f32

    print("KERNEL_OK")
</pallas_src>

<mosaic_0001>
module attributes {stable_mosaic.version = 11 : i64} {
  func.func @extra_embedding3d_kernel(%arg0: i32, %arg1: memref<4xf32, #tpu.memory_space<smem>>, %arg2: memref<16x1xf32, #tpu.memory_space<vmem>>, %arg3: memref<8x16xf32, #tpu.memory_space<vmem>>, %arg4: memref<64x16xbf16, #tpu.memory_space<vmem>>, %arg5: memref<66x32xbf16, #tpu.memory_space<vmem>>, %arg6: memref<16x32xf32, #tpu.memory_space<vmem>>) attributes {dimension_semantics = [#tpu.dimension_semantics<parallel>], iteration_bounds = array<i64: 1>, scalar_prefetch = 0 : i64, scratch_operands = 0 : i64, tpu.core_type = #tpu.core_type<tc>, window_params = [{transform_indices = @transform_0, window_bounds = array<i64: 4>}, {pipeline_mode = #tpu.pipeline_mode<synchronous>, transform_indices = @transform_1, window_bounds = array<i64: 16, 1>}, {pipeline_mode = #tpu.pipeline_mode<synchronous>, transform_indices = @transform_2, window_bounds = array<i64: 8, 16>}, {pipeline_mode = #tpu.pipeline_mode<synchronous>, transform_indices = @transform_3, window_bounds = array<i64: 64, 16>}, {pipeline_mode = #tpu.pipeline_mode<synchronous>, transform_indices = @transform_4, window_bounds = array<i64: 66, 32>}, {transform_indices = @transform_5, window_bounds = array<i64: 16, 32>}]} {
    %c0 = arith.constant 0 : index
    %c0_0 = arith.constant 0 : index
    %0 = vector.load %arg3[%c0, %c0_0] : memref<8x16xf32, #tpu.memory_space<vmem>>, vector<1x16xf32>
    %c1 = arith.constant 1 : index
    %c0_1 = arith.constant 0 : index
    %1 = vector.load %arg3[%c1, %c0_1] : memref<8x16xf32, #tpu.memory_space<vmem>>, vector<1x16xf32>
    %cst = arith.constant dense<0.000000e+00> : vector<1xf32>
    %2 = vector.multi_reduction <add>, %0, %cst [1] : vector<1x16xf32> to vector<1xf32>
    %3 = vector.shape_cast %2 : vector<1xf32> to vector<1x1xf32>
    %cst_2 = arith.constant 6.250000e-02 : f32
    %4 = vector.broadcast %cst_2 : f32 to vector<1x1xf32>
    %5 = arith.mulf %3, %4 : vector<1x1xf32>
    %cst_3 = arith.constant dense<0.000000e+00> : vector<1xf32>
    %6 = vector.multi_reduction <add>, %1, %cst_3 [1] : vector<1x16xf32> to vector<1xf32>
    %7 = vector.shape_cast %6 : vector<1xf32> to vector<1x1xf32>
    %cst_4 = arith.constant 6.250000e-02 : f32
    %8 = vector.broadcast %cst_4 : f32 to vector<1x1xf32>
    %9 = arith.mulf %7, %8 : vector<1x1xf32>
    %10 = arith.mulf %0, %0 : vector<1x16xf32>
    %cst_5 = arith.constant dense<0.000000e+00> : vector<1xf32>
    %11 = vector.multi_reduction <add>, %10, %cst_5 [1] : vector<1x16xf32> to vector<1xf32>
    %12 = vector.shape_cast %11 : vector<1xf32> to vector<1x1xf32>
    %cst_6 = arith.constant 6.250000e-02 : f32
    %13 = vector.broadcast %cst_6 : f32 to vector<1x1xf32>
    %14 = arith.mulf %12, %13 : vector<1x1xf32>
    %c0_7 = arith.constant 0 : index
    %c0_8 = arith.constant 0 : index
    %15 = vector.load %arg2[%c0_7, %c0_8] : memref<16x1xf32, #tpu.memory_space<vmem>>, vector<8x1xf32>
    %c0_9 = arith.constant 0 : index
    %16 = memref.load %arg1[%c0_9] : memref<4xf32, #tpu.memory_space<smem>>
    %cst_10 = arith.constant dense<0.000000e+00> : vector<1xf32>
    %17 = vector.multi_reduction <add>, %15, %cst_10 [0] : vector<8x1xf32> to vector<1xf32>
    %18 = vector.shape_cast %17 : vector<1xf32> to vector<1x1xf32>
    %cst_11 = arith.constant 1.250000e-01 : f32
    %19 = vector.broadcast %cst_11 : f32 to vector<1x1xf32>
    %20 = arith.mulf %18, %19 : vector<1x1xf32>
    %21 = vector.broadcast %20 : vector<1x1xf32> to vector<8x1xf32>
    %22 = arith.subf %15, %21 : vector<8x1xf32>
    %23 = arith.mulf %22, %22 : vector<8x1xf32>
    %cst_12 = arith.constant dense<0.000000e+00> : vector<1xf32>
    %24 = vector.multi_reduction <add>, %23, %cst_12 [0] : vector<8x1xf32> to vector<1xf32>
    %25 = vector.shape_cast %24 : vector<1xf32> to vector<1x1xf32>
    %cst_13 = arith.constant 1.250000e-01 : f32
    %26 = vector.broadcast %cst_13 : f32 to vector<1x1xf32>
    %27 = arith.mulf %25, %26 : vector<1x1xf32>
    %28 = arith.mulf %20, %5 : vector<1x1xf32>
    %29 = arith.addf %28, %9 : vector<1x1xf32>
    %30 = vector.broadcast %20 : vector<1x1xf32> to vector<1x16xf32>
    %31 = arith.mulf %30, %0 : vector<1x16xf32>
    %32 = arith.addf %31, %1 : vector<1x16xf32>
    %33 = vector.broadcast %29 : vector<1x1xf32> to vector<1x16xf32>
    %34 = arith.subf %32, %33 : vector<1x16xf32>
    %35 = arith.mulf %27, %14 : vector<1x1xf32>
    %36 = arith.mulf %34, %34 : vector<1x16xf32>
    %cst_14 = arith.constant dense<0.000000e+00> : vector<1xf32>
    %37 = vector.multi_reduction <add>, %36, %cst_14 [1] : vector<1x16xf32> to vector<1xf32>
    %38 = vector.shape_cast %37 : vector<1xf32> to vector<1x1xf32>
    %cst_15 = arith.constant 6.250000e-02 : f32
    %39 = vector.broadcast %cst_15 : f32 to vector<1x1xf32>
    %40 = arith.mulf %38, %39 : vector<1x1xf32>
    %41 = arith.addf %35, %40 : vector<1x1xf32>
    %cst_16 = arith.constant 9.99999974E-6 : f32
    %42 = vector.broadcast %cst_16 : f32 to vector<1x1xf32>
    %43 = arith.addf %41, %42 : vector<1x1xf32>
    %44 = math.rsqrt %43 : vector<1x1xf32>
    %45 = vector.broadcast %16 : f32 to vector<1x1xf32>
    %46 = arith.mulf %45, %44 : vector<1x1xf32>
    %c8 = arith.constant 8 : index
    %c0_17 = arith.constant 0 : index
    %47 = vector.load %arg2[%c8, %c0_17] : memref<16x1xf32, #tpu.memory_space<vmem>>, vector<8x1xf32>
    %c1_18 = arith.constant 1 : index
    %48 = memref.load %arg1[%c1_18] : memref<4xf32, #tpu.memory_space<smem>>
    %cst_19 = arith.constant dense<0.000000e+00> : vector<1xf32>
    %49 = vector.multi_reduction <add>, %47, %cst_19 [0] : vector<8x1xf32> to vector<1xf32>
    %50 = vector.shape_cast %49 : vector<1xf32> to vector<1x1xf32>
    %cst_20 = arith.constant 1.250000e-01 : f32
    %51 = vector.broadcast %cst_20 : f32 to vector<1x1xf32>
    %52 = arith.mulf %50, %51 : vector<1x1xf32>
    %53 = vector.broadcast %52 : vector<1x1xf32> to vector<8x1xf32>
    %54 = arith.subf %47, %53 : vector<8x1xf32>
    %55 = arith.mulf %54, %54 : vector<8x1xf32>
    %cst_21 = arith.constant dense<0.000000e+00> : vector<1xf32>
    %56 = vector.multi_reduction <add>, %55, %cst_21 [0] : vector<8x1xf32> to vector<1xf32>
    %57 = vector.shape_cast %56 : vector<1xf32> to vector<1x1xf32>
    %cst_22 = arith.constant 1.250000e-01 : f32
    %58 = vector.broadcast %cst_22 : f32 to vector<1x1xf32>
    %59 = arith.mulf %57, %58 : vector<1x1xf32>
    %60 = arith.mulf %52, %5 : vector<1x1xf32>
    %61 = arith.addf %60, %9 : vector<1x1xf32>
    %62 = vector.broadcast %52 : vector<1x1xf32> to vector<1x16xf32>
    %63 = arith.mulf %62, %0 : vector<1x16xf32>
    %64 = arith.addf %63, %1 : vector<1x16xf32>
    %65 = vector.broadcast %61 : vector<1x1xf32> to vector<1x16xf32>
    %66 = arith.subf %64, %65 : vector<1x16xf32>
    %67 = arith.mulf %59, %14 : vector<1x1xf32>
    %68 = arith.mulf %66, %66 : vector<1x16xf32>
    %cst_23 = arith.constant dense<0.000000e+00> : vector<1xf32>
    %69 = vector.multi_reduction <add>, %68, %cst_23 [1] : vector<1x16xf32> to vector<1xf32>
    %70 = vector.shape_cast %69 : vector<1xf32> to vector<1x1xf32>
    %cst_24 = arith.constant 6.250000e-02 : f32
    %71 = vector.broadcast %cst_24 : f32 to vector<1x1xf32>
    %72 = arith.mulf %70, %71 : vector<1x1xf32>
    %73 = arith.addf %67, %72 : vector<1x1xf32>
    %cst_25 = arith.constant 9.99999974E-6 : f32
    %74 = vector.broadcast %cst_25 : f32 to vector<1x1xf32>
    %75 = arith.addf %73, %74 : vector<1x1xf32>
    %76 = math.rsqrt %75 : vector<1x1xf32>
    %77 = vector.broadcast %48 : f32 to vector<1x1xf32>
    %78 = arith.mulf %77, %76 : vector<1x1xf32>
    %c16_i32 = arith.constant 16 : i32
    %79 = arith.muli %arg0, %c16_i32 : i32
    %80 = tpu.assume_multiple %79, 8 : i32
    %81 = arith.index_cast %80 : i32 to index
    %c0_26 = arith.constant 0 : index
    %82 = vector.load %arg2[%81, %c0_26] : memref<16x1xf32, #tpu.memory_space<vmem>>, vector<16x1xf32>
    %c16_i32_27 = arith.constant 16 : i32
    %83 = arith.muli %arg0, %c16_i32_27 : i32
    %84 = tpu.iota {dimensions = array<i32: 0>} : vector<16x1xi32>
    %85 = vector.broadcast %83 : i32 to vector<16x1xi32>
    %86 = arith.addi %85, %84 : vector<16x1xi32>
    %c8_i32 = arith.constant 8 : i32
    %87 = vector.broadcast %c8_i32 : i32 to vector<16x1xi32>
    %88 = arith.cmpi slt, %86, %87 : vector<16x1xi32>
    %89 = vector.shape_cast %29 : vector<1x1xf32> to vector<1x1xf32>
    %90 = vector.broadcast %89 : vector<1x1xf32> to vector<16x1xf32>
    %91 = vector.shape_cast %61 : vector<1x1xf32> to vector<1x1xf32>
    %92 = vector.broadcast %91 : vector<1x1xf32> to vector<16x1xf32>
    %93 = arith.select %88, %90, %92 : vector<16x1xi1>, vector<16x1xf32>
    %94 = vector.shape_cast %46 : vector<1x1xf32> to vector<1x1xf32>
    %95 = vector.broadcast %94 : vector<1x1xf32> to vector<16x1xf32>
    %96 = vector.shape_cast %78 : vector<1x1xf32> to vector<1x1xf32>
    %97 = vector.broadcast %96 : vector<1x1xf32> to vector<16x1xf32>
    %98 = arith.select %88, %95, %97 : vector<16x1xi1>, vector<16x1xf32>
    %c2 = arith.constant 2 : index
    %99 = memref.load %arg1[%c2] : memref<4xf32, #tpu.memory_space<smem>>
    %c3 = arith.constant 3 : index
    %100 = memref.load %arg1[%c3] : memref<4xf32, #tpu.memory_space<smem>>
    %101 = vector.broadcast %99 : f32 to vector<16x1xf32>
    %102 = vector.broadcast %100 : f32 to vector<16x1xf32>
    %103 = arith.select %88, %101, %102 : vector<16x1xi1>, vector<16x1xf32>
    %cst_28 = arith.constant 0.000000e+00 : f32
    %cst_29 = arith.constant 0.000000e+00 : f32
    %104 = vector.broadcast %cst_28 : f32 to vector<16x1xf32>
    %105 = vector.broadcast %cst_29 : f32 to vector<16x1xf32>
    %106 = arith.select %88, %104, %105 : vector<16x1xi1>, vector<16x1xf32>
    %cst_30 = arith.constant 1.000000e+01 : f32
    %cst_31 = arith.constant 1.000000e+00 : f32
    %107 = vector.broadcast %cst_30 : f32 to vector<16x1xf32>
    %108 = vector.broadcast %cst_31 : f32 to vector<16x1xf32>
    %109 = arith.select %88, %107, %108 : vector<16x1xi1>, vector<16x1xf32>
    %cst_32 = arith.constant 1.000000e-01 : f32
    %cst_33 = arith.constant 1.000000e+00 : f32
    %110 = vector.broadcast %cst_32 : f32 to vector<16x1xf32>
    %111 = vector.broadcast %cst_33 : f32 to vector<16x1xf32>
    %112 = arith.select %88, %110, %111 : vector<16x1xi1>, vector<16x1xf32>
    %113 = vector.broadcast %82 : vector<16x1xf32> to vector<16x16xf32>
    %114 = vector.broadcast %0 : vector<1x16xf32> to vector<16x16xf32>
    %115 = arith.mulf %113, %114 : vector<16x16xf32>
    %116 = vector.broadcast %1 : vector<1x16xf32> to vector<16x16xf32>
    %117 = arith.addf %115, %116 : vector<16x16xf32>
    %118 = vector.broadcast %93 : vector<16x1xf32> to vector<16x16xf32>
    %119 = arith.subf %117, %118 : vector<16x16xf32>
    %120 = vector.broadcast %98 : vector<16x1xf32> to vector<16x16xf32>
    %121 = arith.mulf %119, %120 : vector<16x16xf32>
    %122 = vector.broadcast %103 : vector<16x1xf32> to vector<16x16xf32>
    %123 = arith.addf %121, %122 : vector<16x16xf32>
    %124 = arith.maximumf %106, %82 : vector<16x1xf32>
    %125 = arith.minimumf %109, %124 : vector<16x1xf32>
    %126 = arith.subf %125, %106 : vector<16x1xf32>
    %127 = arith.mulf %126, %112 : vector<16x1xf32>
    %cst_34 = arith.constant 3.200000e+01 : f32
    %128 = vector.broadcast %cst_34 : f32 to vector<16x1xf32>
    %129 = arith.mulf %127, %128 : vector<16x1xf32>
    %130 = math.floor %129 : vector<16x1xf32>
    %131 = arith.fptosi %130 : vector<16x1xf32> to vector<16x1xi32>
    %c0_i32 = arith.constant 0 : i32
    %c31_i32 = arith.constant 31 : i32
    %132 = vector.broadcast %c0_i32 : i32 to vector<16x1xi32>
    %133 = arith.maxsi %132, %131 : vector<16x1xi32>
    %134 = vector.broadcast %c31_i32 : i32 to vector<16x1xi32>
    %135 = arith.minsi %134, %133 : vector<16x1xi32>
    %c0_i32_35 = arith.constant 0 : i32
    %c32_i32 = arith.constant 32 : i32
    %136 = vector.broadcast %c0_i32_35 : i32 to vector<16x1xi32>
    %137 = vector.broadcast %c32_i32 : i32 to vector<16x1xi32>
    %138 = arith.select %88, %136, %137 : vector<16x1xi1>, vector<16x1xi32>
    %139 = arith.addi %135, %138 : vector<16x1xi32>
    %140 = tpu.iota {dimensions = array<i32: 1>} : vector<16x64xi32>
    %141 = vector.broadcast %139 : vector<16x1xi32> to vector<16x64xi32>
    %142 = arith.cmpi eq, %140, %141 : vector<16x64xi32>
    %cst_36 = arith.constant 1.000000e+00 : f32
    %cst_37 = arith.constant 0.000000e+00 : f32
    %143 = vector.broadcast %cst_36 : f32 to vector<16x64xf32>
    %144 = vector.broadcast %cst_37 : f32 to vector<16x64xf32>
    %145 = arith.select %142, %143, %144 : vector<16x64xi1>, vector<16x64xf32>
    %146 = arith.truncf %145 : vector<16x64xf32> to vector<16x64xbf16>
    %c0_38 = arith.constant 0 : index
    %c0_39 = arith.constant 0 : index
    %147 = vector.load %arg4[%c0_38, %c0_39] : memref<64x16xbf16, #tpu.memory_space<vmem>>, vector<64x16xbf16>
    %cst_40 = arith.constant dense<0.000000e+00> : vector<16x16xf32>
    %148 = tpu.matmul %146, %147, %cst_40 {dimension_numbers = #tpu.dot_dimension_numbers<[1], [0], [0], [1], [0, 0, 1, 1], [], []>} : vector<16x64xbf16>, vector<64x16xbf16>, vector<16x16xf32> -> vector<16x16xf32>
    %c0_41 = arith.constant 0 : index
    %c0_42 = arith.constant 0 : index
    %149 = vector.load %arg5[%c0_41, %c0_42] : memref<66x32xbf16, #tpu.memory_space<vmem>>, vector<16x32xbf16>
    %c16 = arith.constant 16 : index
    %c0_43 = arith.constant 0 : index
    %150 = vector.load %arg5[%c16, %c0_43] : memref<66x32xbf16, #tpu.memory_space<vmem>>, vector<16x32xbf16>
    %c32 = arith.constant 32 : index
    %c0_44 = arith.constant 0 : index
    %151 = vector.load %arg5[%c32, %c0_44] : memref<66x32xbf16, #tpu.memory_space<vmem>>, vector<32x32xbf16>
    %c64 = arith.constant 64 : index
    %c0_45 = arith.constant 0 : index
    %152 = vector.load %arg5[%c64, %c0_45] : memref<66x32xbf16, #tpu.memory_space<vmem>>, vector<1x32xbf16>
    %153 = arith.extf %152 : vector<1x32xbf16> to vector<1x32xf32>
    %c65 = arith.constant 65 : index
    %c0_46 = arith.constant 0 : index
    %154 = vector.load %arg5[%c65, %c0_46] : memref<66x32xbf16, #tpu.memory_space<vmem>>, vector<1x32xbf16>
    %155 = arith.extf %154 : vector<1x32xbf16> to vector<1x32xf32>
    %156 = arith.truncf %123 : vector<16x16xf32> to vector<16x16xbf16>
    %cst_47 = arith.constant dense<0.000000e+00> : vector<16x32xf32>
    %157 = tpu.matmul %156, %149, %cst_47 {dimension_numbers = #tpu.dot_dimension_numbers<[1], [0], [0], [1], [0, 0, 1, 1], [], []>} : vector<16x16xbf16>, vector<16x32xbf16>, vector<16x32xf32> -> vector<16x32xf32>
    %158 = arith.truncf %148 : vector<16x16xf32> to vector<16x16xbf16>
    %cst_48 = arith.constant dense<0.000000e+00> : vector<16x32xf32>
    %159 = tpu.matmul %158, %150, %cst_48 {dimension_numbers = #tpu.dot_dimension_numbers<[1], [0], [0], [1], [0, 0, 1, 1], [], []>} : vector<16x16xbf16>, vector<16x32xbf16>, vector<16x32xf32> -> vector<16x32xf32>
    %160 = arith.addf %157, %159 : vector<16x32xf32>
    %161 = vector.broadcast %153 : vector<1x32xf32> to vector<16x32xf32>
    %162 = arith.addf %160, %161 : vector<16x32xf32>
    %cst_49 = arith.constant 0.000000e+00 : f32
    %163 = vector.broadcast %cst_49 : f32 to vector<16x32xf32>
    %164 = arith.maximumf %162, %163 : vector<16x32xf32>
    %165 = math.absf %162 : vector<16x32xf32>
    %cst_50 = arith.constant 0.000000e+00 : f32
    %166 = vector.broadcast %cst_50 : f32 to vector<16x32xf32>
    %167 = arith.subf %166, %165 : vector<16x32xf32>
    %168 = math.exp %167 : vector<16x32xf32>
    %169 = math.log1p %168 : vector<16x32xf32>
    %170 = arith.addf %164, %169 : vector<16x32xf32>
    %171 = arith.truncf %170 : vector<16x32xf32> to vector<16x32xbf16>
    %cst_51 = arith.constant dense<0.000000e+00> : vector<16x32xf32>
    %172 = tpu.matmul %171, %151, %cst_51 {dimension_numbers = #tpu.dot_dimension_numbers<[1], [0], [0], [1], [0, 0, 1, 1], [], []>} : vector<16x32xbf16>, vector<32x32xbf16>, vector<16x32xf32> -> vector<16x32xf32>
    %173 = vector.broadcast %155 : vector<1x32xf32> to vector<16x32xf32>
    %174 = arith.addf %172, %173 : vector<16x32xf32>
    %c0_52 = arith.constant 0 : index
    %c0_53 = arith.constant 0 : index
    %175 = vector.load %arg6[%c0_52, %c0_53] : memref<16x32xf32, #tpu.memory_space<vmem>>, vector<16x32xf32>
    tpu.vector_store %arg6[%c0_52, %c0_53], %174 {strides = array<i32>} : memref<16x32xf32, #tpu.memory_space<vmem>>, vector<16x32xf32>,
    return
  }
  func.func @transform_0(%arg0: i32) -> i32 {
    %c0_i32 = arith.constant 0 : i32
    %c0_i32_0 = arith.constant 0 : i32
    return %c0_i32 : i32
  }
  func.func @transform_1(%arg0: i32) -> (i32, i32) {
    %c0_i32 = arith.constant 0 : i32
    %c0_i32_0 = arith.constant 0 : i32
    %c0_i32_1 = arith.constant 0 : i32
    return %c0_i32, %c0_i32_0 : i32, i32
  }
  func.func @transform_2(%arg0: i32) -> (i32, i32) {
    %c0_i32 = arith.constant 0 : i32
    %c0_i32_0 = arith.constant 0 : i32
    %c0_i32_1 = arith.constant 0 : i32
    return %c0_i32, %c0_i32_0 : i32, i32
  }
  func.func @transform_3(%arg0: i32) -> (i32, i32) {
    %c0_i32 = arith.constant 0 : i32
    %c0_i32_0 = arith.constant 0 : i32
    %c0_i32_1 = arith.constant 0 : i32
    return %c0_i32, %c0_i32_0 : i32, i32
  }
  func.func @transform_4(%arg0: i32) -> (i32, i32) {
    %c0_i32 = arith.constant 0 : i32
    %c0_i32_0 = arith.constant 0 : i32
    %c0_i32_1 = arith.constant 0 : i32
    return %c0_i32, %c0_i32_0 : i32, i32
  }
  func.func @transform_5(%arg0: i32) -> (i32, i32) {
    %c0_i32 = arith.constant 0 : i32
    %c0_i32_0 = arith.constant 0 : i32
    return %arg0, %c0_i32 : i32, i32
  }
}

</mosaic_0001>

<llo_original>
// kernel: tpu_custom_call.1
$region0: #{tpu_custom_call.1}
  #allocation0 [shape = 'u32[]', space=smem, size = 0x4, offset = 0x4, fixed_abs, tag = 'smem constant byte address 0x4 - core index']
  #allocation1 [shape = 'u32[144,128]{1,0:T(1,128)}', space=vmem, size = 0x12000, scoped, tag = 'internal scratch']
  %s0 = inlined_call_operand.vmem [shape: f32[4], index: 0, kind: input, shape index: {}]
  %s1 = inlined_call_operand.vmem [shape: f32[16,1], index: 1, kind: input, shape index: {}]
  %s2 = inlined_call_operand.vmem [shape: f32[8,16], index: 2, kind: input, shape index: {}]
  %s3 = inlined_call_operand.vmem [shape: bf16[64,16], index: 3, kind: input, shape index: {}]
  %s4 = inlined_call_operand.vmem [shape: bf16[66,32], index: 4, kind: input, shape index: {}]
  %s5 = inlined_call_operand.hbm [shape: f32[16,32], index: 5, kind: output, shape index: {}]
  %s6 = sld [smem:[#allocation0]]
  $region34: #{tpu_custom_call.1} parent=0
    _
  %s8 = ssub.s32 1, %s6
  %s9 = scalar_select 0, %s8, %s6
  $region1: #{tpu_custom_call.1} parent=0
    #allocation2 [shape = 'u8[512]{0}', space=smem, size = 0x200, scoped, tag = 'input window, operand 0, single buffered']
    #allocation3 [shape = 's32[1]{0}', space=sflag, size = 0x4, scoped, tag = 'scoped memory for tpu_custom_call.1']
    #allocation4 [shape = 's32[1]{0}', space=sflag, size = 0x4, scoped, tag = 'scoped memory for tpu_custom_call.1']
    #allocation5 [shape = 'u8[8192]{0}', space=vmem, size = 0x2000, scoped, tag = 'output window, operand 0, single buffered']
    %10 = vsyncpa [#allocation4], 0
    %11 = vsyncpa [#allocation3], 0
    // Predicated region
    $region2: #{tpu_custom_call.1} parent=1 // pred_check
      _
    $region3: #{tpu_custom_call.1} parent=1 // pred_check_branch
      %13 = sbr.rel (0) target = $region5
    $region4: #{tpu_custom_call.1} parent=1 // pred_region
      %s15 = ssub.s32 16, 16
      %16 = vsyncadd [#allocation4], %s15
      %s18 = sshll.u32 %s0, 4
      %s19 = int_to_ptr.vmem [resolvable:$true] %s18
      %21 = dma.vmem_to_smem %s19, 16, [#allocation2], [#allocation4]
    $region5: #{tpu_custom_call.1} parent=1 // pred_fallthru
      _
    // Predicated region
    $region6: #{tpu_custom_call.1} parent=1 // pred_check
      _
    $region7: #{tpu_custom_call.1} parent=1 // pred_check_branch
      %23 = sbr.rel (0) target = $region9
    $region8: #{tpu_custom_call.1} parent=1 // pred_region
      _
    $region9: #{tpu_custom_call.1} parent=1 // pred_fallthru
      _
    // Predicated region
    $region10: #{tpu_custom_call.1} parent=1 // pred_check
      _
    $region11: #{tpu_custom_call.1} parent=1 // pred_check_branch
      %25 = sbr.rel (0) target = $region13
    $region12: #{tpu_custom_call.1} parent=1 // pred_region
      _
    $region13: #{tpu_custom_call.1} parent=1 // pred_fallthru
      _
    // Predicated region
    $region14: #{tpu_custom_call.1} parent=1 // pred_check
      _
    $region15: #{tpu_custom_call.1} parent=1 // pred_check_branch
      %27 = sbr.rel (0) target = $region17
    $region16: #{tpu_custom_call.1} parent=1 // pred_region
      _
    $region17: #{tpu_custom_call.1} parent=1 // pred_fallthru
      _
    // Predicated region
    $region18: #{tpu_custom_call.1} parent=1 // pred_check
      _
    $region19: #{tpu_custom_call.1} parent=1 // pred_check_branch
      %29 = sbr.rel (0) target = $region21
    $region20: #{tpu_custom_call.1} parent=1 // pred_region
      _
    $region21: #{tpu_custom_call.1} parent=1 // pred_fallthru
      _
    // Predicated region
    $region22: #{tpu_custom_call.1} parent=1 // pred_check
      _
    $region23: #{tpu_custom_call.1} parent=1 // pred_check_branch
      %31 = sbr.rel (0) target = $region25
    $region24: #{tpu_custom_call.1} parent=1 // pred_region
      %32 = dma.done [#allocation4], 16
    $region25: #{tpu_custom_call.1} parent=1 // pred_fallthru
      _
    %33 = sfence
    %v35 = vld [vmem:[%s2] sm:$0x1]
    %v36 = vld [vmem:[%s2 + $0x1] sm:$0x1]
    %vm37 = vcmask 122880
    %v38 = vsel %vm37, %v35, 0.0
    %39 = vadd.xlane.f32.xlu0 %v38
    %v40 = vpop.xlane.xlu0 %39
    %v41 = vmul.f32 %v40, 0.0625
    %v42 = vsel %vm37, %v36, 0.0
    %43 = vadd.xlane.f32.xlu0 %v42
    %v44 = vpop.xlane.xlu0 %43
    %v45 = vmul.f32 %v44, 0.0625
    %v46 = vmul.f32 %v35, %v35
    %v47 = vsel %vm37, %v46, 0.0
    %48 = vadd.xlane.f32.xlu0 %v47
    %v49 = vpop.xlane.xlu0 %48
    %v50 = vmul.f32 %v49, 0.0625
    %v51 = vld [vmem:[%s1] sm:$0xff]
    %s52 = sld [smem:[#allocation2]]
    %vm53 = vcmask 7168
    %v54 = vsel %vm53, %v51, 0.0
    %v55 = vrot.slane %v54, 4
    %v56 = vadd.f32 %v54, %v55
    %v57 = vrot.slane %v56, 2
    %v58 = vadd.f32 %v56, %v57
    %v59 = vrot.slane %v58, 1
    %v60 = vadd.f32 %v58, %v59
    %v61 = vmul.f32 %v60, 0.125
    %v62 = vsub.f32 %v51, %v61
    %v63 = vmul.f32 %v62, %v62
    %v64 = vsel %vm53, %v63, 0.0
    %v65 = vrot.slane %v64, 4
    %v66 = vadd.f32 %v64, %v65
    %v67 = vrot.slane %v66, 2
    %v68 = vadd.f32 %v66, %v67
    %v69 = vrot.slane %v68, 1
    %v70 = vadd.f32 %v68, %v69
    %v71 = vmul.f32 %v70, 0.125
    %v72 = vmul.f32 %v61, %v41
    %v73 = vadd.f32 %v72, %v45
    %75 = vset.pattern.permute.xlu0 0
    %76 = vperm.xlu0 %75, %v61
    %v77 = vpop.permute.xlu0 %76
    %v79 = vmul.f32 %v77, %v35
    %v80 = vadd.f32 %v79, %v36
    %82 = vset.pattern.permute.xlu0 0
    %83 = vperm.xlu0 %82, %v73
    %v84 = vpop.permute.xlu0 %83
    %v86 = vsub.f32 %v80, %v84
    %v87 = vmul.f32 %v71, %v50
    %v88 = vmul.f32 %v86, %v86
    %v89 = vsel %vm37, %v88, 0.0
    %90 = vadd.xlane.f32.xlu0 %v89
    %v91 = vpop.xlane.xlu0 %90
    %v92 = vmul.f32 %v91, 0.0625
    %v93 = vadd.f32 %v87, %v92
    %v94 = vadd.f32 %v93, 1e-05
    %v95 = vrsqrt.pop %v94
    %v96 = vstv %s52
    %v97 = vmul.f32 %v96, %v95
    %v98 = vld [vmem:[%s1 + $0x8] sm:$0xff]
    %s99 = sld [smem:[#allocation2 + $0x1]]
    %v100 = vsel %vm53, %v98, 0.0
    %v101 = vrot.slane %v100, 4
    %v102 = vadd.f32 %v100, %v101
    %v103 = vrot.slane %v102, 2
    %v104 = vadd.f32 %v102, %v103
    %v105 = vrot.slane %v104, 1
    %v106 = vadd.f32 %v104, %v105
    %v107 = vmul.f32 %v106, 0.125
    %v108 = vsub.f32 %v98, %v107
    %v109 = vmul.f32 %v108, %v108
    %v110 = vsel %vm53, %v109, 0.0
    %v111 = vrot.slane %v110, 4
    %v112 = vadd.f32 %v110, %v111
    %v113 = vrot.slane %v112, 2
    %v114 = vadd.f32 %v112, %v113
    %v115 = vrot.slane %v114, 1
    %v116 = vadd.f32 %v114, %v115
    %v117 = vmul.f32 %v116, 0.125
    %v118 = vmul.f32 %v107, %v41
    %v119 = vadd.f32 %v118, %v45
    %121 = vset.pattern.permute.xlu0 0
    %122 = vperm.xlu0 %121, %v107
    %v123 = vpop.permute.xlu0 %122
    %v125 = vmul.f32 %v123, %v35
    %v126 = vadd.f32 %v125, %v36
    %128 = vset.pattern.permute.xlu0 0
    %129 = vperm.xlu0 %128, %v119
    %v130 = vpop.permute.xlu0 %129
    %v132 = vsub.f32 %v126, %v130
    %v133 = vmul.f32 %v117, %v50
    %v134 = vmul.f32 %v132, %v132
    %v135 = vsel %vm37, %v134, 0.0
    %136 = vadd.xlane.f32.xlu0 %v135
    %v137 = vpop.xlane.xlu0 %136
    %v138 = vmul.f32 %v137, 0.0625
    %v139 = vadd.f32 %v133, %v138
    %v140 = vadd.f32 %v139, 1e-05
    %v141 = vrsqrt.pop %v140
    %v142 = vstv %s99
    %v143 = vmul.f32 %v142, %v141
    %s144 = smul.u32 0, 16
    %s145 = scalar_lea.vmem %s1, %s144
    %v146 = vld [vmem:[%s145] sm:$0xff]
    %v147 = vld [vmem:[%s145 + $0x8] sm:$0xff]
    %v148 = vlaneseq
    %v149 = vshrl.u32 %v148, 7
    %v150 = vadd.s32 %v149, 8
    %v151 = vstv %s144
    %v152 = vadd.s32 %v151, %v149
    %v153 = vadd.s32 %v151, %v150
    %vm154 = vcmp.lt.s32.totalorder %v152, 8
    %vm155 = vcmp.lt.s32.totalorder %v153, 8
    %v156 = vlaneseq
    %v157 = vshrl.u32 %v156, 7
    %v158 = vsub.s32 0, %v157
    %v159 = vrot.slane %v73, %v158
    %v160 = vlaneseq
    %v161 = vshrl.u32 %v160, 7
    %v162 = vsub.s32 0, %v161
    %v163 = vrot.slane %v119, %v162
    %v164 = vsel %vm154, %v159, %v163
    %v165 = vsel %vm155, %v159, %v163
    %v166 = vlaneseq
    %v167 = vshrl.u32 %v166, 7
    %v168 = vsub.s32 0, %v167
    %v169 = vrot.slane %v97, %v168
    %v170 = vlaneseq
    %v171 = vshrl.u32 %v170, 7
    %v172 = vsub.s32 0, %v171
    %v173 = vrot.slane %v143, %v172
    %v174 = vsel %vm154, %v169, %v173
    %v175 = vsel %vm155, %v169, %v173
    %s176 = sld [smem:[#allocation2 + $0x2]]
    %s177 = sld [smem:[#allocation2 + $0x3]]
    %v178 = vstv %s176
    %v179 = vstv %s177
    %v180 = vsel %vm154, %v178, %v179
    %v181 = vsel %vm155, %v178, %v179
    %v182 = vsel %vm154, 10.0, 1.0
    %v183 = vsel %vm155, 10.0, 1.0
    %v184 = vsel %vm154, 0.1, 1.0
    %v185 = vsel %vm155, 0.1, 1.0
    %187 = vset.pattern.permute.xlu0 0
    %188 = vperm.xlu0 %187, %v146
    %v189 = vpop.permute.xlu0 %188
    %192 = vset.pattern.permute.xlu0 0
    %193 = vperm.xlu0 %192, %v147
    %v194 = vpop.permute.xlu0 %193
    %v196 = vlaneseq
    %v197 = vshrl.u32 %v196, 7
    %v198 = vsub.s32 0, %v197
    %v199 = vrot.slane %v35, %v198
    %v200 = vmul.f32 %v189, %v199
    %v201 = vmul.f32 %v194, %v199
    %v202 = vlaneseq
    %v203 = vshrl.u32 %v202, 7
    %v204 = vsub.s32 0, %v203
    %v205 = vrot.slane %v36, %v204
    %v206 = vadd.f32 %v200, %v205
    %v207 = vadd.f32 %v201, %v205
    %209 = vset.pattern.permute.xlu0 0
    %210 = vperm.xlu0 %209, %v164
    %v211 = vpop.permute.xlu0 %210
    %214 = vset.pattern.permute.xlu0 0
    %215 = vperm.xlu0 %214, %v165
    %v216 = vpop.permute.xlu0 %215
    %v218 = vsub.f32 %v206, %v211
    %v219 = vsub.f32 %v207, %v216
    %221 = vset.pattern.permute.xlu0 0
    %222 = vperm.xlu0 %221, %v174
    %v223 = vpop.permute.xlu0 %222
    %226 = vset.pattern.permute.xlu0 0
    %227 = vperm.xlu0 %226, %v175
    %v228 = vpop.permute.xlu0 %227
    %v230 = vmul.f32 %v218, %v223
    %v231 = vmul.f32 %v219, %v228
    %v232 = vadd.f32 %v230, %v180
    %v233 = vadd.f32 %v231, %v181
    %v234 = vmax.f32 %v146, 0.0
    %v235 = vmax.f32 %v147, 0.0
    %v236 = vmin.f32 %v182, %v234
    %v237 = vmin.f32 %v183, %v235
    %v238 = vmul.f32 %v236, %v184
    %v239 = vmul.f32 %v237, %v185
    %v240 = vmul.f32 %v238, 32.0
    %v241 = vmul.f32 %v239, 32.0
    %v242 = vfloor.f32 %v240
    %v243 = vfloor.f32 %v241
    %v244 = vcvt.f32.s32.to.zero.pseudo %v242
    %v245 = vcvt.f32.s32.to.zero.pseudo %v243
    %vm246 = vcmp.gt.s32.totalorder %v244, 0
    %v247 = vsel %vm246, %v244, 0
    %vm248 = vcmp.gt.s32.totalorder %v245, 0
    %v249 = vsel %vm248, %v245, 0
    %vm250 = vcmp.lt.s32.totalorder %v247, 31
    %v251 = vsel %vm250, %v247, 31
    %vm252 = vcmp.lt.s32.totalorder %v249, 31
    %v253 = vsel %vm252, %v249, 31
    %v254 = vsel %vm154, 0, 32
    %v255 = vsel %vm155, 0, 32
    %v256 = vadd.s32 %v251, %v254
    %v257 = vadd.s32 %v253, %v255
    %v258 = vlaneseq
    %v259 = vand.u32 %v258, 127
    %260 = vset.pattern.permute.xlu0 0
    %261 = vperm.xlu0 %260, %v256
    %v262 = vpop.permute.xlu0 %261
    %263 = vset.pattern.permute.xlu0 0
    %264 = vperm.xlu0 %263, %v257
    %v265 = vpop.permute.xlu0 %264
    %vm266 = vcmp.eq.s32.totalorder %v259, %v262
    %vm267 = vcmp.eq.s32.totalorder %v259, %v265
    %v268 = vsel %vm266, 1.0, 0.0
    %v269 = vsel %vm267, 1.0, 0.0
    %v270 = vpack.c.bf16 %v269, %v268
    %v271 = vld [vmem:[%s3] sm:$0xf]
    %v272 = vld [vmem:[%s3 + $0x4] sm:$0xf]
    %v273 = vld [vmem:[%s3 + $0x8] sm:$0xf]
    %v274 = vld [vmem:[%s3 + $0xc] sm:$0xf]
    %v275 = vld [vmem:[%s3 + $0x10] sm:$0xf]
    %v276 = vld [vmem:[%s3 + $0x14] sm:$0xf]
    %v277 = vld [vmem:[%s3 + $0x18] sm:$0xf]
    %v278 = vld [vmem:[%s3 + $0x1c] sm:$0xf]
    %v287 = vunpack.c.l.b16 %v271
    %v288 = vunpack.c.l.b16 %v272
    %v289 = vunpack.c.l.b16 %v273
    %v290 = vunpack.c.l.b16 %v274
    %v291 = vunpack.c.l.b16 %v275
    %v292 = vunpack.c.l.b16 %v276
    %v293 = vunpack.c.l.b16 %v277
    %v294 = vunpack.c.l.b16 %v278
    %v295 = vpack.c.b16 %v288, %v287
    %v296 = vpack.c.b16 %v290, %v289
    %v297 = vpack.c.b16 %v292, %v291
    %v298 = vpack.c.b16 %v294, %v293
    %vm303 = vcmask 523264
    %v305 = vsel %vm303, %v270, 0
    %307 = vmatprep.subr.bf16.mxu0 0
    %308 = vmatpush1.bf16.msra.mxu0 %v295
    %309 = vmatprep.subr.bf16.mxu0 0
    %310 = vmatpush1.bf16.msra.mxu0 %v296
    %311 = vmatprep.subr.bf16.mxu0 0
    %312 = vmatpush1.bf16.msra.mxu0 %v297
    %313 = vmatprep.subr.bf16.mxu0 0
    %314 = vmatpush1.bf16.msra.mxu0 %v298
    %315 = vmatprep.subr.bf16.mxu0 0
    %316 = vmatpush1.bf16.msra.mxu0 0
    %317 = vmatprep.subr.bf16.mxu0 0
    %318 = vmatpush1.bf16.msra.mxu0 0
    %319 = vmatprep.subr.bf16.mxu0 0
    %320 = vmatpush1.bf16.msra.mxu0 0
    %321 = vmatprep.subr.bf16.mxu0 0
    %322 = vmatpush1.bf16.msra.mxu0 0
    %323 = vmatprep.subr.bf16.mxu0 0
    %324 = vmatpush1.bf16.msra.mxu0 0
    %325 = vmatprep.subr.bf16.mxu0 0
    %326 = vmatpush1.bf16.msra.mxu0 0
    %327 = vmatprep.subr.bf16.mxu0 0
    %328 = vmatpush1.bf16.msra.mxu0 0
    %329 = vmatprep.subr.bf16.mxu0 0
    %330 = vmatpush1.bf16.msra.mxu0 0
    %331 = vmatprep.subr.bf16.mxu0 0
    %332 = vmatpush1.bf16.msra.mxu0 0
    %333 = vmatprep.subr.bf16.mxu0 0
    %334 = vmatpush1.bf16.msra.mxu0 0
    %335 = vmatprep.subr.bf16.mxu0 0
    %336 = vmatpush1.bf16.msra.mxu0 0
    %337 = vmatprep.subr.bf16.mxu0 0
    %338 = vmatpush1.bf16.msra.mxu0 0
    %339 = vmatprep.mubr.bf16.mxu0 0
    %340 = vmatmul.mubr.bf16.gmra.mrb[0].mxu0 %v305
    %v341 = vpop.f32.mrb[0].mxu0
    %v342 = vadd.f32 0.0, %v341
    %v343 = vpop.f32.mrb[0].mxu0
    %v344 = vpop.f32.mrb[0].mxu0
    %v345 = vadd.f32 0.0, %v344
    %v346 = vpop.f32.mrb[0].mxu0
    %347 = vdwg.mxu0
    %v348 = vld [vmem:[%s4] sm:$0xf]
    %v349 = vld [vmem:[%s4 + $0x4] sm:$0xf]
    %v350 = vld [vmem:[%s4 + $0x8] sm:$0xf]
    %v351 = vld [vmem:[%s4 + $0xc] sm:$0xf]
    %v352 = vld [vmem:[%s4 + $0x10] sm:$0xf]
    %v353 = vld [vmem:[%s4 + $0x14] sm:$0xf]
    %v354 = vld [vmem:[%s4 + $0x18] sm:$0xf]
    %v355 = vld [vmem:[%s4 + $0x1c] sm:$0xf]
    %v356 = vld [vmem:[%s4 + $0x20] sm:$0x1]
    %v357 = vunpack.c.l.bf16 %v356
    %v358 = vpack.c.bf16 %v233, %v232
    %v359 = vpack.c.bf16 %v345, %v342
    %v362 = vunpack.c.l.b16 %v350
    %v363 = vunpack.c.l.b16 %v351
    %v364 = vpack.c.b16 %v363, %v362
    %vm366 = vcmask 130048
    %v368 = vsel %vm366, %v359, 0
    %370 = vmatprep.subr.bf16.mxu0 0
    %371 = vmatpush1.bf16.msra.mxu0 %v364
    %372 = vmatprep.subr.bf16.mxu0 0
    %373 = vmatpush1.bf16.msra.mxu0 0
    %374 = vmatprep.subr.bf16.mxu0 0
    %375 = vmatpush1.bf16.msra.mxu0 0
    %376 = vmatprep.subr.bf16.mxu0 0
    %377 = vmatpush1.bf16.msra.mxu0 0
    %378 = vmatprep.subr.bf16.mxu0 0
    %379 = vmatpush1.bf16.msra.mxu0 0
    %380 = vmatprep.subr.bf16.mxu0 0
    %381 = vmatpush1.bf16.msra.mxu0 0
    %382 = vmatprep.subr.bf16.mxu0 0
    %383 = vmatpush1.bf16.msra.mxu0 0
    %384 = vmatprep.subr.bf16.mxu0 0
    %385 = vmatpush1.bf16.msra.mxu0 0
    %386 = vmatprep.subr.bf16.mxu0 0
    %387 = vmatpush1.bf16.msra.mxu0 0
    %388 = vmatprep.subr.bf16.mxu0 0
    %389 = vmatpush1.bf16.msra.mxu0 0
    %390 = vmatprep.subr.bf16.mxu0 0
    %391 = vmatpush1.bf16.msra.mxu0 0
    %392 = vmatprep.subr.bf16.mxu0 0
    %393 = vmatpush1.bf16.msra.mxu0 0
    %394 = vmatprep.subr.bf16.mxu0 0
    %395 = vmatpush1.bf16.msra.mxu0 0
    %396 = vmatprep.subr.bf16.mxu0 0
    %397 = vmatpush1.bf16.msra.mxu0 0
    %398 = vmatprep.subr.bf16.mxu0 0
    %399 = vmatpush1.bf16.msra.mxu0 0
    %400 = vmatprep.subr.bf16.mxu0 0
    %401 = vmatpush1.bf16.msra.mxu0 0
    %402 = vmatprep.mubr.bf16.mxu0 0
    %403 = vmatmul.mubr.bf16.gmra.mrb[0].mxu0 %v368
    %v404 = vpop.f32.mrb[0].mxu0
    %v405 = vadd.f32 0.0, %v404
    %v406 = vpop.f32.mrb[0].mxu0
    %v407 = vpop.f32.mrb[0].mxu0
    %v408 = vadd.f32 0.0, %v407
    %v409 = vpop.f32.mrb[0].mxu0
    %410 = vdwg.mxu0
    %v413 = vunpack.c.l.b16 %v348
    %v414 = vunpack.c.l.b16 %v349
    %v415 = vpack.c.b16 %v414, %v413
    %v418 = vsel %vm366, %v358, 0
    %420 = vmatprep.subr.bf16.mxu0 0
    %421 = vmatpush1.bf16.msra.mxu0 %v415
    %422 = vmatprep.subr.bf16.mxu0 0
    %423 = vmatpush1.bf16.msra.mxu0 0
    %424 = vmatprep.subr.bf16.mxu0 0
    %425 = vmatpush1.bf16.msra.mxu0 0
    %426 = vmatprep.subr.bf16.mxu0 0
    %427 = vmatpush1.bf16.msra.mxu0 0
    %428 = vmatprep.subr.bf16.mxu0 0
    %429 = vmatpush1.bf16.msra.mxu0 0
    %430 = vmatprep.subr.bf16.mxu0 0
    %431 = vmatpush1.bf16.msra.mxu0 0
    %432 = vmatprep.subr.bf16.mxu0 0
    %433 = vmatpush1.bf16.msra.mxu0 0
    %434 = vmatprep.subr.bf16.mxu0 0
    %435 = vmatpush1.bf16.msra.mxu0 0
    %436 = vmatprep.subr.bf16.mxu0 0
    %437 = vmatpush1.bf16.msra.mxu0 0
    %438 = vmatprep.subr.bf16.mxu0 0
    %439 = vmatpush1.bf16.msra.mxu0 0
    %440 = vmatprep.subr.bf16.mxu0 0
    %441 = vmatpush1.bf16.msra.mxu0 0
    %442 = vmatprep.subr.bf16.mxu0 0
    %443 = vmatpush1.bf16.msra.mxu0 0
    %444 = vmatprep.subr.bf16.mxu0 0
    %445 = vmatpush1.bf16.msra.mxu0 0
    %446 = vmatprep.subr.bf16.mxu0 0
    %447 = vmatpush1.bf16.msra.mxu0 0
    %448 = vmatprep.subr.bf16.mxu0 0
    %449 = vmatpush1.bf16.msra.mxu0 0
    %450 = vmatprep.subr.bf16.mxu0 0
    %451 = vmatpush1.bf16.msra.mxu0 0
    %452 = vmatprep.mubr.bf16.mxu0 0
    %453 = vmatmul.mubr.bf16.gmra.mrb[0].mxu0 %v418
    %v454 = vpop.f32.mrb[0].mxu0
    %v455 = vadd.f32 %v405, %v454
    %v456 = vpop.f32.mrb[0].mxu0
    %v457 = vpop.f32.mrb[0].mxu0
    %v458 = vadd.f32 %v408, %v457
    %v459 = vpop.f32.mrb[0].mxu0
    %460 = vdwg.mxu0
    %v461 = vlaneseq
    %v462 = vshrl.u32 %v461, 7
    %v463 = vsub.s32 0, %v462
    %v464 = vrot.slane %v357, %v463
    %v465 = vadd.f32 %v455, %v464
    %v466 = vadd.f32 %v458, %v464
    %v467 = vmax.f32 %v465, 0.0
    %v468 = vmax.f32 %v466, 0.0
    %v469 = vand.u32 2147483647, %v465
    %v470 = vand.u32 2147483647, %v466
    %v471 = vsub.f32 0.0, %v469
    %v472 = vsub.f32 0.0, %v470
    %v473 = vmul.f32 %v471, 1.442695
    %v474 = vpow.pop %v473
    %v475 = vmul.f32 %v472, 1.442695
    %v476 = vpow.pop %v475
    %v477 = vadd.f32 %v474, 1.0
    %v478 = vlog2.pop %v477
    %v479 = vmul.f32 %v478, 0.6931472
    %v480 = vmul.f32 -0.5, %v474
    %v481 = vadd.f32 %v480, 1.0
    %v482 = vmul.f32 %v481, %v474
    %v483 = vand.u32 2147483647, %v474
    %vm484 = vcmp.lt.f32.partialorder %v483, 0.0004427343
    %v485 = vsel %vm484, %v482, %v479
    %v486 = vadd.f32 %v476, 1.0
    %v487 = vlog2.pop %v486
    %v488 = vmul.f32 %v487, 0.6931472
    %v489 = vmul.f32 -0.5, %v476
    %v490 = vadd.f32 %v489, 1.0
    %v491 = vmul.f32 %v490, %v476
    %v492 = vand.u32 2147483647, %v476
    %vm493 = vcmp.lt.f32.partialorder %v492, 0.0004427343
    %v494 = vsel %vm493, %v491, %v488
    %v495 = vadd.f32 %v467, %v485
    %v496 = vadd.f32 %v468, %v494
    %v497 = vpack.c.bf16 %v496, %v495
    %v498 = vlaneseq
    %v499 = vshrl.u32 %v498, 7
    %v500 = vsub.s32 1, %v499
    %v501 = vrot.slane %v357, %v500
    %v506 = vunpack.c.l.b16 %v352
    %v507 = vunpack.c.l.b16 %v353
    %v508 = vunpack.c.l.b16 %v354
    %v509 = vunpack.c.l.b16 %v355
    %v510 = vpack.c.b16 %v507, %v506
    %v511 = vpack.c.b16 %v509, %v508
    %vm514 = vcmask 261120
    %v516 = vsel %vm514, %v497, 0
    %518 = vmatprep.subr.bf16.mxu0 0
    %519 = vmatpush1.bf16.msra.mxu0 %v510
    %520 = vmatprep.subr.bf16.mxu0 0
    %521 = vmatpush1.bf16.msra.mxu0 %v511
    %522 = vmatprep.subr.bf16.mxu0 0
    %523 = vmatpush1.bf16.msra.mxu0 0
    %524 = vmatprep.subr.bf16.mxu0 0
    %525 = vmatpush1.bf16.msra.mxu0 0
    %526 = vmatprep.subr.bf16.mxu0 0
    %527 = vmatpush1.bf16.msra.mxu0 0
    %528 = vmatprep.subr.bf16.mxu0 0
    %529 = vmatpush1.bf16.msra.mxu0 0
    %530 = vmatprep.subr.bf16.mxu0 0
    %531 = vmatpush1.bf16.msra.mxu0 0
    %532 = vmatprep.subr.bf16.mxu0 0
    %533 = vmatpush1.bf16.msra.mxu0 0
    %534 = vmatprep.subr.bf16.mxu0 0
    %535 = vmatpush1.bf16.msra.mxu0 0
    %536 = vmatprep.subr.bf16.mxu0 0
    %537 = vmatpush1.bf16.msra.mxu0 0
    %538 = vmatprep.subr.bf16.mxu0 0
    %539 = vmatpush1.bf16.msra.mxu0 0
    %540 = vmatprep.subr.bf16.mxu0 0
    %541 = vmatpush1.bf16.msra.mxu0 0
    %542 = vmatprep.subr.bf16.mxu0 0
    %543 = vmatpush1.bf16.msra.mxu0 0
    %544 = vmatprep.subr.bf16.mxu0 0
    %545 = vmatpush1.bf16.msra.mxu0 0
    %546 = vmatprep.subr.bf16.mxu0 0
    %547 = vmatpush1.bf16.msra.mxu0 0
    %548 = vmatprep.subr.bf16.mxu0 0
    %549 = vmatpush1.bf16.msra.mxu0 0
    %550 = vmatprep.mubr.bf16.mxu0 0
    %551 = vmatmul.mubr.bf16.gmra.mrb[0].mxu0 %v516
    %v552 = vpop.f32.mrb[0].mxu0
    %v553 = vadd.f32 %v501, %v552
    %v554 = vpop.f32.mrb[0].mxu0
    %v555 = vpop.f32.mrb[0].mxu0
    %v556 = vadd.f32 %v501, %v555
    %v557 = vpop.f32.mrb[0].mxu0
    %558 = vdwg.mxu0
    %559 = vst.msk [vmem:[#allocation5] sm:$0xff] %vm514, %v553
    %560 = vst.msk [vmem:[#allocation5 + $0x8] sm:$0xff] %vm514, %v556
    // Predicated region
    $region26: #{tpu_custom_call.1} parent=1 // pred_check
      _
    $region27: #{tpu_custom_call.1} parent=1 // pred_check_branch
      %562 = sbr.rel (0) target = $region29
    $region28: #{tpu_custom_call.1} parent=1 // pred_region
      %s564 = ssub.s32 256, 256
      %565 = vsyncadd [#allocation3], %s564
      %s566 = sshll.u32 [#allocation5], 4
      %s567 = int_to_ptr.vmem [resolvable:$true] %s566
      %572 = dma.vmem_to_hbm [thread:$0]  %s567, 256, %s5, [#allocation3], 128, 128, 8
    $region29: #{tpu_custom_call.1} parent=1 // pred_fallthru
      _
    // Predicated region
    $region30: #{tpu_custom_call.1} parent=1 // pred_check
      _
    $region31: #{tpu_custom_call.1} parent=1 // pred_check_branch
      %574 = sbr.rel (0) target = $region33
    $region32: #{tpu_custom_call.1} parent=1 // pred_region
      %575 = dma.done [#allocation3], 256
    $region33: #{tpu_custom_call.1} parent=1 // pred_fallthru
      _
    %576 = vsyncpa [#allocation3], 1
    %577 = vsyncpa [#allocation4], 1

</llo_original>
